<compile_context>
chip_gen: v7x
topology: tpu7x:2x2x1
jax: 0.10.0
libtpu: 0.0.40
codegen_flags: <defaults>
</compile_context>

<pallas_src>
import functools

import jax
import jax.numpy as jnp
from jax.experimental import pallas as pl
from jax.experimental.pallas import tpu as pltpu


def _pick_tile(n, cap):
    """Largest divisor of n that is <= cap (blocks exactly cover the array)."""
    t = min(n, cap)
    while n % t:
        t -= 1
    return t


# ----------------------------------------------------------------------------
# Kernel 1: grouped / batched linear   out[g] = x[g] @ w[g] + b[g]
#   x : (G, R, Cin)   w : (G, Cin, Cout)   b : (G, 1, Cout)   out : (G, R, Cout)
# Grid = (G, row_tiles); the row axis is innermost so each weight slab stays
# resident in VMEM while its rows are streamed through (double-buffered by the
# BlockSpec pipeline).  bf16 operands on the MXU, f32 accumulation.
# ----------------------------------------------------------------------------
def _grouped_linear_kernel(x_ref, w_ref, b_ref, o_ref):
    x = x_ref[0].astype(jnp.bfloat16)                      # (tm, Cin)
    w = w_ref[0].astype(jnp.bfloat16)                      # (Cin, Cout)
    acc = jnp.dot(x, w, preferred_element_type=jnp.float32)
    o_ref[0] = (acc + b_ref[0]).astype(o_ref.dtype)        # lane-dense (tm, Cout)


def grouped_linear(x, w, b, *, row_cap=256):
    G, R, Cin = x.shape
    Cout = w.shape[-1]
    tm = _pick_tile(R, row_cap)
    return pl.pallas_call(
        _grouped_linear_kernel,
        out_shape=jax.ShapeDtypeStruct((G, R, Cout), x.dtype),
        grid_spec=pltpu.PrefetchScalarGridSpec(
            num_scalar_prefetch=0,
            grid=(G, R // tm),
            in_specs=[
                pl.BlockSpec((1, tm, Cin), lambda g, r: (g, r, 0)),
                pl.BlockSpec((1, Cin, Cout), lambda g, r: (g, 0, 0)),
                pl.BlockSpec((1, 1, Cout), lambda g, r: (g, 0, 0)),
            ],
            out_specs=pl.BlockSpec((1, tm, Cout), lambda g, r: (g, r, 0)),
        ),
        compiler_params=pltpu.CompilerParams(
            dimension_semantics=("parallel", "parallel"),
            vmem_limit_bytes=32 * 1024 * 1024,
        ),
    )(x, w, b)


# ----------------------------------------------------------------------------
# Kernel 2: flash-style multi-head attention over merged-head layout
#   q : (B, N, C)   k, v : (B, M, C)   out : (B, N, C)   with C = H * D
# Grid = (B, q_blocks, kv_blocks); KV axis innermost, marked "arbitrary".
# Online-softmax state per head lives in VMEM scratch:
#   m_sc : (H, tq, 1)   l_sc : (H, tq, 1)   acc_sc : (H, tq, D)
# Head selection is static channel-axis slicing inside the kernel (no HBM
# transposes); the output is one lane-dense (tq, C) store in the epilogue.
# ----------------------------------------------------------------------------
def _mha_kernel(q_ref, k_ref, v_ref, o_ref, m_sc, l_sc, acc_sc,
                *, scale, num_heads, head_dim):
    ki = pl.program_id(2)

    @pl.when(ki == 0)
    def _init():
        m_sc[...] = jnp.full_like(m_sc, -jnp.inf)
        l_sc[...] = jnp.zeros_like(l_sc)
        acc_sc[...] = jnp.zeros_like(acc_sc)

    # scale applied to q once (O(tq*C)) instead of to the (tq, tkv) scores.
    q_all = (q_ref[0] * scale).astype(jnp.bfloat16)        # (tq, C)
    k_all = k_ref[0].astype(jnp.bfloat16)                  # (tkv, C)
    v_all = v_ref[0].astype(jnp.bfloat16)                  # (tkv, C)

    for h in range(num_heads):                             # static unroll over heads
        sl = slice(h * head_dim, (h + 1) * head_dim)
        q_h = q_all[:, sl]                                 # (tq, D)  bf16
        k_h = k_all[:, sl]                                 # (tkv, D) bf16
        v_h = v_all[:, sl]                                 # (tkv, D) bf16

        # QK^T: contract last dims directly -> no explicit k.T / XLU transpose.
        s = jax.lax.dot_general(
            q_h, k_h, (((1,), (1,)), ((), ())),
            preferred_element_type=jnp.float32)            # (tq, tkv) f32

        m_prev = m_sc[h]                                   # (tq, 1)
        m_new = jnp.maximum(m_prev, jnp.max(s, axis=-1, keepdims=True))
        alpha = jnp.exp(m_prev - m_new)                    # (tq, 1)
        p = jnp.exp(s - m_new)                             # (tq, tkv) f32, unnormalized

        l_sc[h] = alpha * l_sc[h] + jnp.sum(p, axis=-1, keepdims=True)
        pv = jnp.dot(p.astype(jnp.bfloat16), v_h,
                     preferred_element_type=jnp.float32)   # (tq, D)
        acc_sc[h] = alpha * acc_sc[h] + pv
        m_sc[h] = m_new

    @pl.when(ki == pl.num_programs(2) - 1)
    def _finalize():
        # Normalize in the epilogue: O(tq*C) multiplies, reciprocal on the EUP.
        outs = []
        for h in range(num_heads):
            inv_h = pl.reciprocal(l_sc[h], approx=True)    # (tq, 1)
            outs.append(acc_sc[h] * inv_h)                 # (tq, D) f32
        # single lane-dense (tq, C) merged-head store
        o_ref[0] = jnp.concatenate(outs, axis=-1).astype(o_ref.dtype)


def attention(q, k, v, *, scale, num_heads, q_cap=128, kv_cap=256):
    # TODO(synk): for v7x (64 MiB VMEM) halve q_cap/kv_cap when C is large.
    B, N, C = q.shape
    M = k.shape[1]
    head_dim = C // num_heads
    tq = _pick_tile(N, q_cap)
    tkv = _pick_tile(M, kv_cap)
    kernel = functools.partial(
        _mha_kernel, scale=scale, num_heads=num_heads, head_dim=head_dim)
    return pl.pallas_call(
        kernel,
        out_shape=jax.ShapeDtypeStruct((B, N, C), q.dtype),
        grid_spec=pltpu.PrefetchScalarGridSpec(
            num_scalar_prefetch=0,
            grid=(B, N // tq, M // tkv),
            in_specs=[
                pl.BlockSpec((1, tq, C), lambda b, qi, ki: (b, qi, 0)),
                pl.BlockSpec((1, tkv, C), lambda b, qi, ki: (b, ki, 0)),
                pl.BlockSpec((1, tkv, C), lambda b, qi, ki: (b, ki, 0)),
            ],
            out_specs=pl.BlockSpec((1, tq, C), lambda b, qi, ki: (b, qi, 0)),
            scratch_shapes=[
                pltpu.VMEM((num_heads, tq, 1), jnp.float32),         # running max
                pltpu.VMEM((num_heads, tq, 1), jnp.float32),         # running denom
                pltpu.VMEM((num_heads, tq, head_dim), jnp.float32),  # running numer
            ],
        ),
        compiler_params=pltpu.CompilerParams(
            dimension_semantics=("parallel", "parallel", "arbitrary"),
            vmem_limit_bytes=32 * 1024 * 1024,
        ),
    )(q, k, v)


# ----------------------------------------------------------------------------
# Module wrapper (parameters + forward), mirroring MulitHeadAttention
# ----------------------------------------------------------------------------
def init_params(key, dim):
    # nn.Linear default init: U(-1/sqrt(fan_in), 1/sqrt(fan_in)).
    bound = 1.0 / (dim ** 0.5)
    ks = jax.random.split(key, 3)
    return {
        # q/k/v weights pre-stacked (3, Cin, Cout) so the fused projection kernel
        # can index them with a leading grid axis.  qkv_bias=False -> no bias.
        "qkv_w": jax.random.uniform(ks[0], (3, dim, dim), jnp.float32, -bound, bound),
        "proj_w": jax.random.uniform(ks[1], (dim, dim), jnp.float32, -bound, bound),
        "proj_b": jax.random.uniform(ks[2], (dim,), jnp.float32, -bound, bound),
    }


def multi_head_attention(params, q, k, v, num_heads=8, qk_scale=None):
    B, N, C = q.shape
    _, M, _ = k.shape
    head_dim = C // num_heads
    scale = float(qk_scale) if qk_scale is not None else head_dim ** (-0.5)

    zero_b = jnp.zeros((1, 1, C), q.dtype)

    if N == M:
        # Fully fused q/k/v projection: one pallas_call, grid axis over the group.
        x_stack = jnp.stack([q, k, v], axis=0).reshape(3, B * N, C)
        proj = grouped_linear(x_stack, params["qkv_w"],
                              jnp.zeros((3, 1, C), q.dtype))            # (3, B*N, C)
        qp = proj[0].reshape(B, N, C)
        kp = proj[1].reshape(B, M, C)
        vp = proj[2].reshape(B, M, C)
    else:
        # Cross-attention with different sequence lengths: fuse k/v, q separately.
        qp = grouped_linear(q.reshape(1, B * N, C), params["qkv_w"][0:1],
                            zero_b)[0].reshape(B, N, C)
        kv = grouped_linear(jnp.stack([k, v], axis=0).reshape(2, B * M, C),
                            params["qkv_w"][1:3],
                            jnp.zeros((2, 1, C), q.dtype))
        kp = kv[0].reshape(B, M, C)
        vp = kv[1].reshape(B, M, C)

    # Attention on merged-head (B, seq, C) layout; head split done inside the
    # kernel -> no (0,2,1,3) transposes.  attn_drop p=0 -> identity.
    xh = attention(qp, kp, vp, scale=scale, num_heads=num_heads)        # (B, N, C)

    # Output projection (with bias).  proj_drop p=0 -> identity.
    out = grouped_linear(xh.reshape(1, B * N, C), params["proj_w"][None],
                         params["proj_b"].reshape(1, 1, C))[0]
    return out.reshape(B, N, C)


def reference_forward(params, q, k, v, num_heads=8, qk_scale=None):
    """Pure-JAX f32 reference for verification (matches the PyTorch module)."""
    B, N, C = q.shape
    _, M, _ = k.shape
    head_dim = C // num_heads
    scale = float(qk_scale) if qk_scale is not None else head_dim ** (-0.5)
    qp = q.reshape(B * N, C) @ params["qkv_w"][0]
    kp = k.reshape(B * M, C) @ params["qkv_w"][1]
    vp = v.reshape(B * M, C) @ params["qkv_w"][2]
    qh = qp.reshape(B, N, num_heads, head_dim).transpose(0, 2, 1, 3)
    kh = kp.reshape(B, M, num_heads, head_dim).transpose(0, 2, 1, 3)
    vh = vp.reshape(B, M, num_heads, head_dim).transpose(0, 2, 1, 3)
    attn = jnp.einsum("bhnd,bhmd->bhnm", qh, kh) * scale
    attn = jax.nn.softmax(attn, axis=-1)
    xh = jnp.einsum("bhnm,bhmd->bhnd", attn, vh)
    x = xh.transpose(0, 2, 1, 3).reshape(B * N, C)
    x = x @ params["proj_w"] + params["proj_b"]
    return x.reshape(B, N, C)


if __name__ == "__main__":
    key = jax.random.PRNGKey(0)
    B, N, M, C, H = 2, 8, 8, 32, 8

    kq, kk, kv, kp = jax.random.split(key, 4)
    q = jax.random.normal(kq, (B, N, C), jnp.float32)
    k = jax.random.normal(kk, (B, M, C), jnp.float32)
    v = jax.random.normal(kv, (B, M, C), jnp.float32)
    params = init_params(kp, C)

    out = multi_head_attention(params, q, k, v, num_heads=H)
    out = jax.block_until_ready(out)

    ref = reference_forward(params, q, k, v, num_heads=H)
    assert out.shape == (B, N, C)
    # bf16 MXU operands + approx reciprocal -> loosened tolerance vs f32 reference.
    assert jnp.allclose(out, ref, atol=2e-2, rtol=2e-2), "mismatch vs reference"

    print("KERNEL_OK")
</pallas_src>

<mosaic_0001>
module attributes {stable_mosaic.version = 11 : i64} {
  func.func @_grouped_linear_kernel(%arg0: i32, %arg1: i32, %arg2: memref<1x16x32xf32, #tpu.memory_space<vmem>>, %arg3: memref<1x32x32xf32, #tpu.memory_space<vmem>>, %arg4: memref<1x1x32xf32, #tpu.memory_space<vmem>>, %arg5: memref<1x16x32xf32, #tpu.memory_space<vmem>>) attributes {dimension_semantics = [#tpu.dimension_semantics<parallel>, #tpu.dimension_semantics<parallel>], iteration_bounds = array<i64: 3, 1>, scalar_prefetch = 0 : i64, scratch_operands = 0 : i64, tpu.core_type = #tpu.core_type<tc>, window_params = [{transform_indices = @transform_0, window_bounds = array<i64: 1, 16, 32>}, {transform_indices = @transform_1, window_bounds = array<i64: 1, 32, 32>}, {transform_indices = @transform_2, window_bounds = array<i64: 1, 1, 32>}, {transform_indices = @transform_3, window_bounds = array<i64: 1, 16, 32>}]} {
    %c0 = arith.constant 0 : index
    %c0_0 = arith.constant 0 : index
    %c0_1 = arith.constant 0 : index
    %0 = vector.load %arg2[%c0, %c0_0, %c0_1] : memref<1x16x32xf32, #tpu.memory_space<vmem>>, vector<1x16x32xf32>
    %1 = vector.shape_cast %0 : vector<1x16x32xf32> to vector<16x32xf32>
    %2 = arith.truncf %1 : vector<16x32xf32> to vector<16x32xbf16>
    %c0_2 = arith.constant 0 : index
    %c0_3 = arith.constant 0 : index
    %c0_4 = arith.constant 0 : index
    %3 = vector.load %arg3[%c0_2, %c0_3, %c0_4] : memref<1x32x32xf32, #tpu.memory_space<vmem>>, vector<1x32x32xf32>
    %4 = vector.shape_cast %3 : vector<1x32x32xf32> to vector<32x32xf32>
    %5 = arith.truncf %4 : vector<32x32xf32> to vector<32x32xbf16>
    %cst = arith.constant dense<0.000000e+00> : vector<16x32xf32>
    %6 = tpu.matmul %2, %5, %cst {dimension_numbers = #tpu.dot_dimension_numbers<[1], [0], [0], [1], [0, 0, 1, 1], [], []>} : vector<16x32xbf16>, vector<32x32xbf16>, vector<16x32xf32> -> vector<16x32xf32>
    %c0_5 = arith.constant 0 : index
    %c0_6 = arith.constant 0 : index
    %c0_7 = arith.constant 0 : index
    %7 = vector.load %arg4[%c0_5, %c0_6, %c0_7] : memref<1x1x32xf32, #tpu.memory_space<vmem>>, vector<1x1x32xf32>
    %8 = vector.shape_cast %7 : vector<1x1x32xf32> to vector<1x32xf32>
    %9 = vector.broadcast %8 : vector<1x32xf32> to vector<16x32xf32>
    %10 = arith.addf %6, %9 : vector<16x32xf32>
    %c0_8 = arith.constant 0 : index
    %c0_9 = arith.constant 0 : index
    %c0_10 = arith.constant 0 : index
    %11 = vector.load %arg5[%c0_8, %c0_9, %c0_10] : memref<1x16x32xf32, #tpu.memory_space<vmem>>, vector<1x16x32xf32>
    %12 = vector.shape_cast %11 : vector<1x16x32xf32> to vector<16x32xf32>
    %13 = vector.shape_cast %10 : vector<16x32xf32> to vector<1x16x32xf32>
    tpu.vector_store %arg5[%c0_8, %c0_9, %c0_10], %13 {strides = array<i32>} : memref<1x16x32xf32, #tpu.memory_space<vmem>>, vector<1x16x32xf32>,
    return
  }
  func.func @transform_0(%arg0: i32, %arg1: i32) -> (i32, i32, i32) {
    %c0_i32 = arith.constant 0 : i32
    %c0_i32_0 = arith.constant 0 : i32
    return %arg0, %arg1, %c0_i32 : i32, i32, i32
  }
  func.func @transform_1(%arg0: i32, %arg1: i32) -> (i32, i32, i32) {
    %c0_i32 = arith.constant 0 : i32
    %c0_i32_0 = arith.constant 0 : i32
    %c0_i32_1 = arith.constant 0 : i32
    return %arg0, %c0_i32, %c0_i32_0 : i32, i32, i32
  }
  func.func @transform_2(%arg0: i32, %arg1: i32) -> (i32, i32, i32) {
    %c0_i32 = arith.constant 0 : i32
    %c0_i32_0 = arith.constant 0 : i32
    %c0_i32_1 = arith.constant 0 : i32
    return %arg0, %c0_i32, %c0_i32_0 : i32, i32, i32
  }
  func.func @transform_3(%arg0: i32, %arg1: i32) -> (i32, i32, i32) {
    %c0_i32 = arith.constant 0 : i32
    %c0_i32_0 = arith.constant 0 : i32
    return %arg0, %arg1, %c0_i32 : i32, i32, i32
  }
}

</mosaic_0001>

<llo_original>
// kernel: tpu_custom_call.1
$region0: #{tpu_custom_call.1}
  #allocation0 [shape = 'u32[]', space=smem, size = 0x4, offset = 0x4, fixed_abs, tag = 'smem constant byte address 0x4 - core index']
  #allocation1 [shape = 'u32[144,128]{1,0:T(1,128)}', space=vmem, size = 0x12000, scoped, tag = 'internal scratch']
  %s0 = inlined_call_operand.hbm [shape: f32[3,16,32], index: 0, kind: input, shape index: {}]
  %s1 = inlined_call_operand.hbm [shape: f32[3,32,32], index: 1, kind: input, shape index: {}]
  %s2 = inlined_call_operand.vmem [shape: f32[3,1,32], index: 2, kind: input, shape index: {}]
  %s3 = inlined_call_operand.hbm [shape: f32[3,16,32], index: 3, kind: output, shape index: {}]
  %s4 = sld [smem:[#allocation0]]
  $region53: #{tpu_custom_call.1} parent=0
    _
  %s6 = ssub.s32 1, %s4
  %s7 = scalar_select 0, %s6, %s4
  $region1: #{tpu_custom_call.1} parent=0
    #allocation2 [shape = 'u8[16384]{0}', space=vmem, size = 0x4000, scoped, tag = 'input window, operand 0']
    #allocation3 [shape = 's32[2]{0}', space=sflag, size = 0x8, scoped, tag = 'scoped memory for tpu_custom_call.1']
    #allocation4 [shape = 's32[2]{0}', space=sflag, size = 0x8, scoped, tag = 'scoped memory for tpu_custom_call.1']
    #allocation5 [shape = 'u8[32768]{0}', space=vmem, size = 0x8000, scoped, tag = 'input window, operand 1']
    #allocation6 [shape = 's32[2]{0}', space=sflag, size = 0x8, scoped, tag = 'scoped memory for tpu_custom_call.1']
    #allocation7 [shape = 'u8[16384]{0}', space=vmem, size = 0x4000, scoped, tag = 'output window, operand 0']
    %8 = vsyncpa [#allocation3], 0
    %s9 = scalar_lea.sflag [#allocation3], 1
    %10 = vsyncpa %s9, 0
    %11 = vsyncpa [#allocation6], 0
    %s12 = scalar_lea.sflag [#allocation6], 1
    %13 = vsyncpa %s12, 0
    %14 = vsyncpa [#allocation4], 0
    %s15 = scalar_lea.sflag [#allocation4], 1
    %16 = vsyncpa %s15, 0
    loop: start=0, step=1, limit=5
    $region2: #{tpu_custom_call.1} parent=1 // loop_pre_header
      _
    $region3: #{tpu_custom_call.1} parent=1 // loop_header
      %s18 = sphi 0, %s22
      %p19 = scmp.ge.s32.totalorder %s18, 5
      %s25 = sphi 0, %s37
      %s26 = sphi 0, %s33
      %s27 = sphi 0, %s25
      %s28 = sphi 0, %s26
      %s29 = sphi 0, %s27
      %s30 = sphi 0, %s28
      %s42 = sphi 0, %s44
      %s45 = sphi 0, %s42
      %s46 = sphi 0, %s45
      %s62 = sphi 0, %s46
      %s68 = sphi 0, %s70
      %s71 = sphi 0, %s68
      %s72 = sphi 0, %s71
      %s88 = sphi 0, %s72
      %s94 = sphi 0, %s96
      %s97 = sphi 0, %s94
      %s98 = sphi 0, %s97
      %s114 = sphi 0, %s98
      %s122 = sphi 0, %s124
      %s125 = sphi 0, %s122
      %s126 = sphi 0, %s125
      %s142 = sphi 0, %s126
    $region4: #{tpu_custom_call.1} parent=1 // loop_header_branch
      %21 = sbr.rel (%p19) target = $region8
    $region5: #{tpu_custom_call.1} parent=1 // loop_body
      %s23 = ssub.s32 %s18, 1
      %s24 = ssub.s32 %s18, 2
      %s31 = sadd.s32 1, %s26
      %p32 = scmp.ge.s32.totalorder %s31, 1
      %s33 = scalar_select %p32, 0, %s31
      %s34 = sadd.s32 1, %s25
      %s35 = scalar_select %p32, %s34, %s25
      %p36 = scmp.ge.s32.totalorder %s35, 3
      %s37 = scalar_select %p36, 0, %s35
      %s38 = ssub.s32 %s25, %s37
      %s39 = ssub.s32 %s26, %s33
      %s40 = sor.u32 %s38, %s39
      %p41 = scmp.eq.s32.totalorder %s40, 0
      %s43 = sadd.s32 %s42, 1
      %s44 = scalar_select %p41, %s42, %s43
      %p47 = pneg %p41
      %p48 = scmp.eq.s32.totalorder %s18, 2
      %p49 = por %p47, %p48
      %p50 = scmp.ne.s32.totalorder %s42, %s45
      %p51 = scmp.eq.s32.totalorder %s18, 0
      %p52 = por %p50, %p51
      %p53 = scmp.ne.s32.totalorder %s42, %s45
      %p54 = scmp.eq.s32.totalorder %s23, 2
      %p55 = por %p53, %p54
      %p56 = scmp.ne.s32.totalorder %s45, %s46
      %p57 = scmp.eq.s32.totalorder %s23, 0
      %p58 = por %p56, %p57
      %p59 = scmp.ne.s32.totalorder %s45, %s46
      %p60 = scmp.eq.s32.totalorder %s24, 2
      %p61 = por %p59, %p60
      %p63 = scmp.ne.s32.totalorder %s46, %s62
      %p64 = scmp.eq.s32.totalorder %s24, 0
      %p65 = por %p63, %p64
      %s66 = ssub.s32 %s25, %s37
      %p67 = scmp.eq.s32.totalorder %s66, 0
      %s69 = sadd.s32 %s68, 1
      %s70 = scalar_select %p67, %s68, %s69
      %p73 = pneg %p67
      %p74 = scmp.eq.s32.totalorder %s18, 2
      %p75 = por %p73, %p74
      %p76 = scmp.ne.s32.totalorder %s68, %s71
      %p77 = scmp.eq.s32.totalorder %s18, 0
      %p78 = por %p76, %p77
      %p79 = scmp.ne.s32.totalorder %s68, %s71
      %p80 = scmp.eq.s32.totalorder %s23, 2
      %p81 = por %p79, %p80
      %p82 = scmp.ne.s32.totalorder %s71, %s72
      %p83 = scmp.eq.s32.totalorder %s23, 0
      %p84 = por %p82, %p83
      %p85 = scmp.ne.s32.totalorder %s71, %s72
      %p86 = scmp.eq.s32.totalorder %s24, 2
      %p87 = por %p85, %p86
      %p89 = scmp.ne.s32.totalorder %s72, %s88
      %p90 = scmp.eq.s32.totalorder %s24, 0
      %p91 = por %p89, %p90
      %s92 = ssub.s32 %s25, %s37
      %p93 = scmp.eq.s32.totalorder %s92, 0
      %s95 = sadd.s32 %s94, 1
      %s96 = scalar_select %p93, %s94, %s95
      %p99 = pneg %p93
      %p100 = scmp.eq.s32.totalorder %s18, 2
      %p101 = por %p99, %p100
      %p102 = scmp.ne.s32.totalorder %s94, %s97
      %p103 = scmp.eq.s32.totalorder %s18, 0
      %p104 = por %p102, %p103
      %p105 = scmp.ne.s32.totalorder %s94, %s97
      %p106 = scmp.eq.s32.totalorder %s23, 2
      %p107 = por %p105, %p106
      %p108 = scmp.ne.s32.totalorder %s97, %s98
      %p109 = scmp.eq.s32.totalorder %s23, 0
      %p110 = por %p108, %p109
      %p111 = scmp.ne.s32.totalorder %s97, %s98
      %p112 = scmp.eq.s32.totalorder %s24, 2
      %p113 = por %p111, %p112
      %p115 = scmp.ne.s32.totalorder %s98, %s114
      %p116 = scmp.eq.s32.totalorder %s24, 0
      %p117 = por %p115, %p116
      %s118 = ssub.s32 %s25, %s37
      %s119 = ssub.s32 %s26, %s33
      %s120 = sor.u32 %s118, %s119
      %p121 = scmp.eq.s32.totalorder %s120, 0
      %s123 = sadd.s32 %s122, 1
      %s124 = scalar_select %p121, %s122, %s123
      %p127 = pneg %p121
      %p128 = scmp.eq.s32.totalorder %s18, 2
      %p129 = por %p127, %p128
      %p130 = scmp.ne.s32.totalorder %s122, %s125
      %p131 = scmp.eq.s32.totalorder %s18, 0
      %p132 = por %p130, %p131
      %p133 = scmp.ne.s32.totalorder %s122, %s125
      %p134 = scmp.eq.s32.totalorder %s23, 2
      %p135 = por %p133, %p134
      %p136 = scmp.ne.s32.totalorder %s125, %s126
      %p137 = scmp.eq.s32.totalorder %s23, 0
      %p138 = por %p136, %p137
      %p139 = scmp.ne.s32.totalorder %s125, %s126
      %p140 = scmp.eq.s32.totalorder %s24, 2
      %p141 = por %p139, %p140
      %p143 = scmp.ne.s32.totalorder %s126, %s142
      %p144 = scmp.eq.s32.totalorder %s24, 0
      %p145 = por %p143, %p144
      %p146 = scmp.le.s32.totalorder 1, %s18
      %p147 = scmp.lt.s32.totalorder %s18, 4
      %p148 = pnand %p146, %p147
      %p149 = pneg %p148
      // Predicated region
      $region9: #{tpu_custom_call.1} parent=5 // pred_check
        _
      $region10: #{tpu_custom_call.1} parent=5 // pred_check_branch
        %151 = sbr.rel (%p148) target = $region12
      $region11: #{tpu_custom_call.1} parent=5 // pred_region
        %s152 = ssub.s32 %s18, 1
      $region12: #{tpu_custom_call.1} parent=5 // pred_fallthru
        _
      %p153 = scmp.lt.s32.totalorder %s18, 3
      // Predicated region
      $region13: #{tpu_custom_call.1} parent=5 // pred_check
        %p154 = pneg %p153
      $region14: #{tpu_custom_call.1} parent=5 // pred_check_branch
        %156 = sbr.rel (%p154) target = $region16
      $region15: #{tpu_custom_call.1} parent=5 // pred_region
        // Predicated region
        $region17: #{tpu_custom_call.1} parent=15 // pred_check
          %p157 = pneg %p52
        $region18: #{tpu_custom_call.1} parent=15 // pred_check_branch
          %159 = sbr.rel (%p157) target = $region20
        $region19: #{tpu_custom_call.1} parent=15 // pred_region
          %s160 = sand.u32 %s42, 1
          %s161 = scalar_lea.sflag [#allocation3], %s160
          %s162 = sand.u32 %s42, 1
          %s163 = smul.addr %s162, 16
          %s164 = scalar_lea.vmem [#allocation2], %s163
          %s165 = smul.u32 2, %s26
          %s167 = ssub.s32 256, 256
          %168 = vsyncadd %s161, %s167
          %s169 = smul.addr %s25, 2
          %s170 = sadd.s32 %s165, %s169
          %s171 = smul.addr %s170, 128
          %s172 = scalar_lea.hbm %s0, %s171
          %s173 = sshll.u32 %s164, 4
          %s174 = int_to_ptr.vmem [resolvable:$true] %s173
          %179 = dma.hbm_to_vmem [thread:$0]  %s172, 256, %s174, %s161, 128, 128, 8
        $region20: #{tpu_custom_call.1} parent=15 // pred_fallthru
          _
        // Predicated region
        $region21: #{tpu_custom_call.1} parent=15 // pred_check
          %p180 = pneg %p78
        $region22: #{tpu_custom_call.1} parent=15 // pred_check_branch
          %182 = sbr.rel (%p180) target = $region24
        $region23: #{tpu_custom_call.1} parent=15 // pred_region
          %s183 = sand.u32 %s68, 1
          %s184 = scalar_lea.sflag [#allocation6], %s183
          %s185 = sand.u32 %s68, 1
          %s186 = smul.addr %s185, 32
          %s187 = scalar_lea.vmem [#allocation5], %s186
          %s189 = ssub.s32 512, 512
          %190 = vsyncadd %s184, %s189
          %s191 = smul.addr %s25, 4
          %s192 = smul.addr %s191, 128
          %s193 = scalar_lea.hbm %s1, %s192
          %s194 = sshll.u32 %s187, 4
          %s195 = int_to_ptr.vmem [resolvable:$true] %s194
          %200 = dma.hbm_to_vmem [thread:$0]  %s193, 512, %s195, %s184, 128, 128, 8
        $region24: #{tpu_custom_call.1} parent=15 // pred_fallthru
          _
        // Predicated region
        $region25: #{tpu_custom_call.1} parent=15 // pred_check
          %p201 = pneg %p104
        $region26: #{tpu_custom_call.1} parent=15 // pred_check_branch
          %203 = sbr.rel (%p201) target = $region28
        $region27: #{tpu_custom_call.1} parent=15 // pred_region
          %p204 = scmp.lt.s32.totalorder %s25, 2
          %s205 = scalar_select %p204, %s25, 2
          %s206 = scalar_lea.vmem %s2, %s205
        $region28: #{tpu_custom_call.1} parent=15 // pred_fallthru
          _
      $region16: #{tpu_custom_call.1} parent=5 // pred_fallthru
        _
      %p207 = scmp.le.s32.totalorder 1, %s18
      %p208 = scmp.lt.s32.totalorder %s18, 4
      %p209 = pnand %p207, %p208
      %p210 = pneg %p209
      // Predicated region
      $region29: #{tpu_custom_call.1} parent=5 // pred_check
        _
      $region30: #{tpu_custom_call.1} parent=5 // pred_check_branch
        %212 = sbr.rel (%p209) target = $region32
      $region31: #{tpu_custom_call.1} parent=5 // pred_region
        %s213 = ssub.s32 %s18, 1
        %s214 = sand.u32 %s45, 1
        %s215 = scalar_lea.sflag [#allocation3], %s214
        %s216 = sand.u32 %s45, 1
        %s217 = smul.addr %s216, 16
        %s218 = scalar_lea.vmem [#allocation2], %s217
        // Predicated region
        $region33: #{tpu_custom_call.1} parent=31 // pred_check
          %p219 = pneg %p58
        $region34: #{tpu_custom_call.1} parent=31 // pred_check_branch
          %221 = sbr.rel (%p219) target = $region36
        $region35: #{tpu_custom_call.1} parent=31 // pred_region
          %222 = dma.done %s215, 256
        $region36: #{tpu_custom_call.1} parent=31 // pred_fallthru
          _
        %s223 = sand.u32 %s71, 1
        %s224 = scalar_lea.sflag [#allocation6], %s223
        %s225 = sand.u32 %s71, 1
        %s226 = smul.addr %s225, 32
        %s227 = scalar_lea.vmem [#allocation5], %s226
        // Predicated region
        $region37: #{tpu_custom_call.1} parent=31 // pred_check
          %p228 = pneg %p84
        $region38: #{tpu_custom_call.1} parent=31 // pred_check_branch
          %230 = sbr.rel (%p228) target = $region40
        $region39: #{tpu_custom_call.1} parent=31 // pred_region
          %231 = dma.done %s224, 512
        $region40: #{tpu_custom_call.1} parent=31 // pred_fallthru
          _
        %s232 = sand.u32 %s45, 1
        %s233 = scalar_lea.sflag [#allocation3], %s232
        %s234 = sand.u32 %s45, 1
        %s235 = smul.addr %s234, 16
        %s236 = scalar_lea.vmem [#allocation2], %s235
        %p237 = pneg %p58
        %p238 = pneg %p55
        %s239 = sand.u32 %s71, 1
        %s240 = scalar_lea.sflag [#allocation6], %s239
        %s241 = sand.u32 %s71, 1
        %s242 = smul.addr %s241, 32
        %s243 = scalar_lea.vmem [#allocation5], %s242
        %p244 = pneg %p84
        %p245 = pneg %p81
        %p246 = scmp.lt.s32.totalorder %s27, 2
        %s247 = scalar_select %p246, %s27, 2
        %s248 = scalar_lea.vmem %s2, %s247
        %p249 = pneg %p110
        %p250 = pneg %p107
        %p251 = pneg %p138
        %p252 = pneg %p135
        %s253 = sand.u32 %s125, 1
        %s254 = scalar_lea.sflag [#allocation4], %s253
        %s255 = sand.u32 %s125, 1
        %s256 = smul.addr %s255, 16
        %s257 = scalar_lea.vmem [#allocation7], %s256
        %s258 = smul.u32 2, %s28
        %p259 = scmp.lt.s32.totalorder %s27, 2
        %s260 = scalar_select %p259, %s27, 2
        %s261 = scalar_lea.vmem %s2, %s260
        %s262 = smul.u32 2, %s28
        %v264 = vld [vmem:[%s218] sm:$0xff]
        %v265 = vld [vmem:[%s218 + $0x8] sm:$0xff]
        %v266 = vpack.c.bf16 %v265, %v264
        %v267 = vld [vmem:[%s227] sm:$0xff]
        %v268 = vld [vmem:[%s227 + $0x8] sm:$0xff]
        %v269 = vld [vmem:[%s227 + $0x10] sm:$0xff]
        %v270 = vld [vmem:[%s227 + $0x18] sm:$0xff]
        %v271 = vpack.c.bf16 %v268, %v267
        %v272 = vpack.c.bf16 %v270, %v269
        %v273 = vld [vmem:[%s261] sm:$0x1]
        %v275 = vlaneseq
        %v276 = vshrl.u32 %v275, 7
        %v277 = vsub.s32 0, %v276
        %v278 = vrot.slane %v273, %v277
        %vm280 = vcmask 261120
        %v282 = vsel %vm280, %v266, 0
        %284 = vmatprep.subr.bf16.mxu0 0
        %285 = vmatpush1.bf16.msra.mxu0 %v271
        %286 = vmatprep.subr.bf16.mxu0 0
        %287 = vmatpush1.bf16.msra.mxu0 %v272
        %288 = vmatprep.subr.bf16.mxu0 0
        %289 = vmatpush1.bf16.msra.mxu0 0
        %290 = vmatprep.subr.bf16.mxu0 0
        %291 = vmatpush1.bf16.msra.mxu0 0
        %292 = vmatprep.subr.bf16.mxu0 0
        %293 = vmatpush1.bf16.msra.mxu0 0
        %294 = vmatprep.subr.bf16.mxu0 0
        %295 = vmatpush1.bf16.msra.mxu0 0
        %296 = vmatprep.subr.bf16.mxu0 0
        %297 = vmatpush1.bf16.msra.mxu0 0
        %298 = vmatprep.subr.bf16.mxu0 0
        %299 = vmatpush1.bf16.msra.mxu0 0
        %300 = vmatprep.subr.bf16.mxu0 0
        %301 = vmatpush1.bf16.msra.mxu0 0
        %302 = vmatprep.subr.bf16.mxu0 0
        %303 = vmatpush1.bf16.msra.mxu0 0
        %304 = vmatprep.subr.bf16.mxu0 0
        %305 = vmatpush1.bf16.msra.mxu0 0
        %306 = vmatprep.subr.bf16.mxu0 0
        %307 = vmatpush1.bf16.msra.mxu0 0
        %308 = vmatprep.subr.bf16.mxu0 0
        %309 = vmatpush1.bf16.msra.mxu0 0
        %310 = vmatprep.subr.bf16.mxu0 0
        %311 = vmatpush1.bf16.msra.mxu0 0
        %312 = vmatprep.subr.bf16.mxu0 0
        %313 = vmatpush1.bf16.msra.mxu0 0
        %314 = vmatprep.subr.bf16.mxu0 0
        %315 = vmatpush1.bf16.msra.mxu0 0
        %316 = vmatprep.mubr.bf16.mxu0 0
        %317 = vmatmul.mubr.bf16.gmra.mrb[0].mxu0 %v282
        %v318 = vpop.f32.mrb[0].mxu0
        %v319 = vadd.f32 %v278, %v318
        %v320 = vpop.f32.mrb[0].mxu0
        %v321 = vpop.f32.mrb[0].mxu0
        %v322 = vadd.f32 %v278, %v321
        %v323 = vpop.f32.mrb[0].mxu0
        %324 = vdwg.mxu0
        %325 = vst.msk [vmem:[%s257] sm:$0xff] %vm280, %v319
        %326 = vst.msk [vmem:[%s257 + $0x8] sm:$0xff] %vm280, %v322
        %s327 = sand.u32 %s125, 1
        %s328 = scalar_lea.sflag [#allocation4], %s327
        %s329 = sand.u32 %s125, 1
        %s330 = smul.addr %s329, 16
        %s331 = scalar_lea.vmem [#allocation7], %s330
        // Predicated region
        $region41: #{tpu_custom_call.1} parent=31 // pred_check
          %p332 = pneg %p135
        $region42: #{tpu_custom_call.1} parent=31 // pred_check_branch
          %334 = sbr.rel (%p332) target = $region44
        $region43: #{tpu_custom_call.1} parent=31 // pred_region
          %s335 = smul.u32 2, %s28
          %s337 = ssub.s32 256, 256
          %338 = vsyncadd %s328, %s337
          %s339 = smul.addr %s27, 2
          %s340 = sadd.s32 %s335, %s339
          %s341 = smul.addr %s340, 128
          %s342 = scalar_lea.hbm %s3, %s341
          %s343 = sshll.u32 %s331, 4
          %s344 = int_to_ptr.vmem [resolvable:$true] %s343
          %349 = dma.vmem_to_hbm [thread:$0]  %s344, 256, %s342, %s328, 128, 128, 8
        $region44: #{tpu_custom_call.1} parent=31 // pred_fallthru
          _
      $region32: #{tpu_custom_call.1} parent=5 // pred_fallthru
        _
      %p350 = scmp.le.s32.totalorder 2, %s18
      // Predicated region
      $region45: #{tpu_custom_call.1} parent=5 // pred_check
        %p351 = pneg %p350
      $region46: #{tpu_custom_call.1} parent=5 // pred_check_branch
        %353 = sbr.rel (%p351) target = $region48
      $region47: #{tpu_custom_call.1} parent=5 // pred_region
        %s354 = ssub.s32 %s18, 2
        // Predicated region
        $region49: #{tpu_custom_call.1} parent=47 // pred_check
          %p355 = pneg %p141
        $region50: #{tpu_custom_call.1} parent=47 // pred_check_branch
          %357 = sbr.rel (%p355) target = $region52
        $region51: #{tpu_custom_call.1} parent=47 // pred_region
          %s358 = sand.u32 %s126, 1
          %s359 = scalar_lea.sflag [#allocation4], %s358
          %s360 = sand.u32 %s126, 1
          %s361 = smul.addr %s360, 16
          %s362 = scalar_lea.vmem [#allocation7], %s361
          %363 = dma.done %s359, 256
        $region52: #{tpu_custom_call.1} parent=47 // pred_fallthru
          _
      $region48: #{tpu_custom_call.1} parent=5 // pred_fallthru
        _
    $region6: #{tpu_custom_call.1} parent=1 // loop_footer
      %s22 = sadd.s32 1, %s18
    $region7: #{tpu_custom_call.1} parent=1 // loop_footer_branch
      %17 = sbr.rel target = $region3
    $region8: #{tpu_custom_call.1} parent=1 // loop_exit
      _
    %364 = vsyncpa [#allocation3], 1
    %s365 = scalar_lea.sflag [#allocation3], 1
    %366 = vsyncpa %s365, 1
    %367 = vsyncpa [#allocation6], 1
    %s368 = scalar_lea.sflag [#allocation6], 1
    %369 = vsyncpa %s368, 1
    %370 = vsyncpa [#allocation4], 1
    %s371 = scalar_lea.sflag [#allocation4], 1
    %372 = vsyncpa %s371, 1

</llo_original>
